<compile_context>
chip_gen: v7x
topology: tpu7x:2x2x1
jax: 0.10.0
libtpu: 0.0.40
codegen_flags: <defaults>
</compile_context>

<pallas_src>
import functools

import jax
import jax.numpy as jnp
from jax.experimental import pallas as pl
from jax.experimental.pallas import tpu as pltpu


# ----------------------------- Pallas kernels ------------------------------

def _conv_relu_stats_kernel(x_ref, w_ref, b_ref, y_ref, psum_ref, psq_ref,
                            acc_ref, *, tm, m_total, need_mask):
    """1x1 conv (K-tiled matmul) + bias + ReLU, fused with per-channel partial
    sums / sums-of-squares for training-mode BatchNorm statistics."""
    k = pl.program_id(1)

    @pl.when(k == 0)
    def _init():
        acc_ref[...] = jnp.zeros_like(acc_ref)

    acc_ref[...] += jnp.dot(x_ref[...], w_ref[...],
                            preferred_element_type=jnp.float32)

    @pl.when(k == pl.num_programs(1) - 1)
    def _finalize():
        y = jnp.maximum(acc_ref[...] + b_ref[...], 0.0)      # bias + act1
        y_ref[...] = y.astype(y_ref.dtype)

        if need_mask:
            row = pl.program_id(0) * tm + jax.lax.broadcasted_iota(
                jnp.int32, (tm, 1), 0)
            ym = jnp.where(row < m_total, y, 0.0)             # drop pad rows
        else:
            ym = y
        s = jnp.sum(ym, axis=0, keepdims=True)                # (1, C16)
        sq = jnp.sum(ym * ym, axis=0, keepdims=True)          # (1, C16)
        # (8, C16) per-tile stat tile: row 0 carries the partials, rows 1..7
        # are copies so the store is a full, unmasked tile write.
        psum_ref[...] = jnp.broadcast_to(s, psum_ref.shape)
        psq_ref[...] = jnp.broadcast_to(sq, psq_ref.shape)


def _bn_relu_kernel(y_ref, scale_ref, shift_ref, o_ref):
    # folded BatchNorm (normalize + affine), then ReLU
    z = y_ref[...] * scale_ref[...] + shift_ref[...]
    o_ref[...] = jnp.maximum(z, 0.0).astype(o_ref.dtype)


# ------------------------------ small helpers -------------------------------

def _round_up(a, b):
    return ((a + b - 1) // b) * b


def _pick_k_tile(cin):
    """Tile the reduction (Cin) axis when the weight is too big for VMEM."""
    if cin <= 1024 or cin % 128 != 0:
        return cin
    for tk in (512, 384, 256, 128):
        if cin % tk == 0:
            return tk
    return cin


def _pick_row_tile(m, tk, c16, budget_bytes=24 * 1024 * 1024):
    """Largest row tile (multiple of 8, <=1024) whose double-buffered conv
    working set fits comfortably in scoped VMEM on every TPU generation
    (v7x has only 64 MiB physical / 32 MiB default scoped)."""
    per_row = (2 * tk + 3 * c16) * 4              # x(2 buf) + y(2 buf) + acc
    fixed = (2 * tk * c16 + 2 * c16 + 32 * c16) * 4   # w(2), bias(2), stats(2x2)
    tm = 1024
    while tm > 8 and fixed + tm * per_row > budget_bytes:
        tm //= 2
    tm = max(tm, 8)
    m_pad8 = _round_up(m, 8)
    if m_pad8 < tm:
        tm = m_pad8                               # single tile for tiny M
    return tm


def _compiler_params(est_bytes, semantics):
    kwargs = dict(dimension_semantics=semantics)
    # v5e's default scoped VMEM is only 16 MiB; raise it when the working set
    # would otherwise shrink buffering, but stay below v7x's 64 MiB physical.
    if est_bytes > 16 * 1024 * 1024:
        kwargs["vmem_limit_bytes"] = int(
            min(max(est_bytes * 3 // 2, 32 * 1024 * 1024), 48 * 1024 * 1024))
    return pltpu.CompilerParams(**kwargs)


# -------------------------------- wrapper ----------------------------------

def yadapt_pixel_shuffle(x_nchw, w, b, gamma, beta, *, r=4, eps=1e-5):
    """Forward pass of YAdaptPixelShuffle.

    x_nchw : [B, Cin, H, W]  (PyTorch NCHW)
    w      : [Cin, Cout*r*r] 1x1-conv weight (PyTorch weight[:, :, 0, 0].T)
    b      : [Cout*r*r]      conv bias
    gamma, beta : [Cout]     BatchNorm affine params
    returns: [B, Cout, H*r, W*r]
    """
    B, Cin, H, W = x_nchw.shape
    Cin_w, C16 = w.shape
    assert Cin == Cin_w and C16 % (r * r) == 0
    Cout = C16 // (r * r)
    M = B * H * W

    # NCHW -> [M, Cin]  (lane axis = input channels); pure layout, done by XLA.
    x_flat = jnp.transpose(x_nchw, (0, 2, 3, 1)).reshape(M, Cin).astype(jnp.float32)
    w_f = w.astype(jnp.float32)
    b2 = b.reshape(1, C16).astype(jnp.float32)

    tk = _pick_k_tile(Cin)
    tm = _pick_row_tile(M, tk, C16)
    M_pad = _round_up(M, tm)
    n_rows = M_pad // tm
    n_k = Cin // tk
    if M_pad != M:
        x_flat = jnp.pad(x_flat, ((0, M_pad - M), (0, 0)))

    # --- pass 1: conv1x1 (K-tiled) + bias + ReLU, fused with channel stats ---
    conv_est = (tm * (2 * tk + 3 * C16) + 2 * tk * C16 + 2 * C16 + 32 * C16) * 4
    kern = functools.partial(_conv_relu_stats_kernel, tm=tm, m_total=M,
                             need_mask=(M_pad != M))
    y, psum, psq = pl.pallas_call(
        kern,
        grid=(n_rows, n_k),
        in_specs=[
            pl.BlockSpec((tm, tk), lambda i, k: (i, k)),
            pl.BlockSpec((tk, C16), lambda i, k: (k, 0)),
            pl.BlockSpec((1, C16), lambda i, k: (0, 0)),
        ],
        out_specs=(
            pl.BlockSpec((tm, C16), lambda i, k: (i, 0)),
            pl.BlockSpec((8, C16), lambda i, k: (i, 0)),
            pl.BlockSpec((8, C16), lambda i, k: (i, 0)),
        ),
        out_shape=(
            jax.ShapeDtypeStruct((M_pad, C16), jnp.float32),
            jax.ShapeDtypeStruct((n_rows * 8, C16), jnp.float32),
            jax.ShapeDtypeStruct((n_rows * 8, C16), jnp.float32),
        ),
        scratch_shapes=[pltpu.VMEM((tm, C16), jnp.float32)],
        compiler_params=_compiler_params(conv_est, ("parallel", "arbitrary")),
    )(x_flat, w_f, b2)

    # --- tiny glue on [C16]-sized vectors: reduce partials, build BN affine --
    ch_sum = psum[::8].sum(axis=0)           # row 0 of each per-tile block
    ch_sq = psq[::8].sum(axis=0)
    inv_count = 1.0 / float(M * r * r)       # elements per BN channel
    mean_c = ch_sum.reshape(Cout, r * r).sum(axis=1) * inv_count
    ex2_c = ch_sq.reshape(Cout, r * r).sum(axis=1) * inv_count
    # Biased (training-mode) variance via E[x^2]-E[x]^2 in f32; clamp >= 0.
    var_c = jnp.maximum(ex2_c - mean_c * mean_c, 0.0)
    inv_std = jax.lax.rsqrt(var_c + eps)
    scale_c = gamma.astype(jnp.float32) * inv_std
    shift_c = beta.astype(jnp.float32) - mean_c * scale_c
    scale16 = jnp.repeat(scale_c, r * r).reshape(1, C16)
    shift16 = jnp.repeat(shift_c, r * r).reshape(1, C16)

    # --- pass 2: BatchNorm normalize+affine + ReLU (lane-dense view) ---------
    fold = 1
    if C16 < 128 and 128 % C16 == 0 and tm % (8 * (128 // C16)) == 0:
        fold = 128 // C16                    # view `fold` rows as one wide row
    M2, C2 = M_pad // fold, C16 * fold
    tm2 = tm // fold

    def _p2_bytes(t):                        # in + out tiles double-buffered
        return 16 * t * C2 + 16 * C2

    while M2 % (tm2 * 2) == 0 and _p2_bytes(tm2 * 2) <= 24 * 1024 * 1024:
        tm2 *= 2                             # pass 2 is mem-bound: bigger tiles

    y2 = y.reshape(M2, C2)
    scale2 = jnp.tile(scale16, (1, fold))
    shift2 = jnp.tile(shift16, (1, fold))
    z2 = pl.pallas_call(
        _bn_relu_kernel,
        grid=(M2 // tm2,),
        in_specs=[
            pl.BlockSpec((tm2, C2), lambda i: (i, 0)),
            pl.BlockSpec((1, C2), lambda i: (0, 0)),
            pl.BlockSpec((1, C2), lambda i: (0, 0)),
        ],
        out_specs=pl.BlockSpec((tm2, C2), lambda i: (i, 0)),
        out_shape=jax.ShapeDtypeStruct((M2, C2), jnp.float32),
        compiler_params=_compiler_params(_p2_bytes(tm2), ("parallel",)),
    )(y2, scale2, shift2)

    # --- glue: PixelShuffle(4) (pure permutation) back to NCHW ---------------
    z = z2.reshape(M_pad, C16)[:M]
    z = z.reshape(B, H, W, Cout, r, r)                 # cols ordered (c, i, j)
    z = jnp.transpose(z, (0, 3, 1, 4, 2, 5))           # -> (B, Cout, H, i, W, j)
    return z.reshape(B, Cout, H * r, W * r)


# ----------------------------- pure-JAX reference ---------------------------

def _reference(x_nchw, w, b, gamma, beta, *, r=4, eps=1e-5):
    y = jnp.einsum('bchw,co->bohw', x_nchw, w) + b[None, :, None, None]
    y = jnp.maximum(y, 0.0)
    B, C16, H, W = y.shape
    Cout = C16 // (r * r)
    y = y.reshape(B, Cout, r, r, H, W)
    y = jnp.transpose(y, (0, 1, 4, 2, 5, 3)).reshape(B, Cout, H * r, W * r)
    mean = y.mean(axis=(0, 2, 3), keepdims=True)
    var = ((y - mean) ** 2).mean(axis=(0, 2, 3), keepdims=True)
    yn = (y - mean) * jax.lax.rsqrt(var + eps)
    yn = yn * gamma[None, :, None, None] + beta[None, :, None, None]
    return jnp.maximum(yn, 0.0)


# ----------------------------------- main -----------------------------------

if __name__ == "__main__":
    key = jax.random.PRNGKey(0)
    kx, kw, kb, kg, kbeta = jax.random.split(key, 5)

    # small shapes consistent with the module (Cin -> Cout*16, upscale x4)
    B, Cin, H, W = 2, 64, 8, 8
    Cout, r = 8, 4
    C16 = Cout * r * r

    x = jax.random.normal(kx, (B, Cin, H, W), dtype=jnp.float32)
    w = jax.random.normal(kw, (Cin, C16), dtype=jnp.float32) * 0.05
    b = jax.random.normal(kb, (C16,), dtype=jnp.float32) * 0.05
    gamma = 1.0 + 0.1 * jax.random.normal(kg, (Cout,), dtype=jnp.float32)
    beta = 0.1 * jax.random.normal(kbeta, (Cout,), dtype=jnp.float32)

    fwd = jax.jit(yadapt_pixel_shuffle, static_argnames=("r", "eps"))
    out = jax.block_until_ready(fwd(x, w, b, gamma, beta, r=r))
    assert out.shape == (B, Cout, H * r, W * r), out.shape

    ref = _reference(x, w, b, gamma, beta, r=r)
    max_err = float(jnp.max(jnp.abs(out - ref)))
    assert jnp.allclose(out, ref, atol=1e-4, rtol=1e-4), max_err

    print("KERNEL_OK")
</pallas_src>

<mosaic_0001>
module attributes {stable_mosaic.version = 11 : i64} {
  func.func @_conv_relu_stats_kernel(%arg0: i32, %arg1: i32, %arg2: memref<128x64xf32, #tpu.memory_space<vmem>>, %arg3: memref<64x128xf32, #tpu.memory_space<vmem>>, %arg4: memref<1x128xf32, #tpu.memory_space<vmem>>, %arg5: memref<128x128xf32, #tpu.memory_space<vmem>>, %arg6: memref<8x128xf32, #tpu.memory_space<vmem>>, %arg7: memref<8x128xf32, #tpu.memory_space<vmem>>, %arg8: memref<128x128xf32, #tpu.memory_space<vmem>>) attributes {dimension_semantics = [#tpu.dimension_semantics<parallel>, #tpu.dimension_semantics<arbitrary>], iteration_bounds = array<i64: 1, 1>, scalar_prefetch = 0 : i64, scratch_operands = 1 : i64, tpu.core_type = #tpu.core_type<tc>, window_params = [{transform_indices = @transform_0, window_bounds = array<i64: 128, 64>}, {transform_indices = @transform_1, window_bounds = array<i64: 64, 128>}, {pipeline_mode = #tpu.pipeline_mode<synchronous>, transform_indices = @transform_2, window_bounds = array<i64: 1, 128>}, {transform_indices = @transform_3, window_bounds = array<i64: 128, 128>}, {transform_indices = @transform_4, window_bounds = array<i64: 8, 128>}, {transform_indices = @transform_5, window_bounds = array<i64: 8, 128>}]} {
    %c0_i32 = arith.constant 0 : i32
    %0 = arith.cmpi eq, %arg1, %c0_i32 : i32
    %1 = arith.extui %0 : i1 to i32
    %c0_i32_0 = arith.constant 0 : i32
    %2 = arith.cmpi ne, %1, %c0_i32_0 : i32
    scf.if %2 {
      %cst_10 = arith.constant 0.000000e+00 : f32
      %12 = vector.broadcast %cst_10 : f32 to vector<128x128xf32>
      %c0_11 = arith.constant 0 : index
      %c0_12 = arith.constant 0 : index
      %13 = vector.load %arg8[%c0_11, %c0_12] : memref<128x128xf32, #tpu.memory_space<vmem>>, vector<128x128xf32>
      tpu.vector_store %arg8[%c0_11, %c0_12], %12 {strides = array<i32>} : memref<128x128xf32, #tpu.memory_space<vmem>>, vector<128x128xf32>,
    } else {
    }
    %c0 = arith.constant 0 : index
    %c0_1 = arith.constant 0 : index
    %3 = vector.load %arg8[%c0, %c0_1] : memref<128x128xf32, #tpu.memory_space<vmem>>, vector<128x128xf32>
    %c0_2 = arith.constant 0 : index
    %c0_3 = arith.constant 0 : index
    %4 = vector.load %arg2[%c0_2, %c0_3] : memref<128x64xf32, #tpu.memory_space<vmem>>, vector<128x64xf32>
    %c0_4 = arith.constant 0 : index
    %c0_5 = arith.constant 0 : index
    %5 = vector.load %arg3[%c0_4, %c0_5] : memref<64x128xf32, #tpu.memory_space<vmem>>, vector<64x128xf32>
    %cst = arith.constant dense<0.000000e+00> : vector<128x128xf32>
    %6 = tpu.matmul %4, %5, %cst {dimension_numbers = #tpu.dot_dimension_numbers<[1], [0], [0], [1], [0, 0, 1, 1], [], []>} : vector<128x64xf32>, vector<64x128xf32>, vector<128x128xf32> -> vector<128x128xf32>
    %7 = arith.addf %3, %6 : vector<128x128xf32>
    %c0_6 = arith.constant 0 : index
    %c0_7 = arith.constant 0 : index
    %8 = vector.load %arg8[%c0_6, %c0_7] : memref<128x128xf32, #tpu.memory_space<vmem>>, vector<128x128xf32>
    tpu.vector_store %arg8[%c0_6, %c0_7], %7 {strides = array<i32>} : memref<128x128xf32, #tpu.memory_space<vmem>>, vector<128x128xf32>,
    %c0_i32_8 = arith.constant 0 : i32
    %9 = arith.cmpi eq, %arg1, %c0_i32_8 : i32
    %10 = arith.extui %9 : i1 to i32
    %c0_i32_9 = arith.constant 0 : i32
    %11 = arith.cmpi ne, %10, %c0_i32_9 : i32
    scf.if %11 {
      %c0_10 = arith.constant 0 : index
      %c0_11 = arith.constant 0 : index
      %12 = vector.load %arg8[%c0_10, %c0_11] : memref<128x128xf32, #tpu.memory_space<vmem>>, vector<128x128xf32>
      %c0_12 = arith.constant 0 : index
      %c0_13 = arith.constant 0 : index
      %13 = vector.load %arg4[%c0_12, %c0_13] : memref<1x128xf32, #tpu.memory_space<vmem>>, vector<1x128xf32>
      %14 = vector.broadcast %13 : vector<1x128xf32> to vector<128x128xf32>
      %15 = arith.addf %12, %14 : vector<128x128xf32>
      %cst_14 = arith.constant 0.000000e+00 : f32
      %16 = vector.broadcast %cst_14 : f32 to vector<128x128xf32>
      %17 = arith.maximumf %15, %16 : vector<128x128xf32>
      %c0_15 = arith.constant 0 : index
      %c0_16 = arith.constant 0 : index
      %18 = vector.load %arg5[%c0_15, %c0_16] : memref<128x128xf32, #tpu.memory_space<vmem>>, vector<128x128xf32>
      tpu.vector_store %arg5[%c0_15, %c0_16], %17 {strides = array<i32>} : memref<128x128xf32, #tpu.memory_space<vmem>>, vector<128x128xf32>,
      %cst_17 = arith.constant dense<0.000000e+00> : vector<128xf32>
      %19 = vector.multi_reduction <add>, %17, %cst_17 [0] : vector<128x128xf32> to vector<128xf32>
      %20 = vector.shape_cast %19 : vector<128xf32> to vector<1x128xf32>
      %21 = arith.mulf %17, %17 : vector<128x128xf32>
      %cst_18 = arith.constant dense<0.000000e+00> : vector<128xf32>
      %22 = vector.multi_reduction <add>, %21, %cst_18 [0] : vector<128x128xf32> to vector<128xf32>
      %23 = vector.shape_cast %22 : vector<128xf32> to vector<1x128xf32>
      %24 = vector.shape_cast %20 : vector<1x128xf32> to vector<1x128xf32>
      %25 = vector.broadcast %24 : vector<1x128xf32> to vector<8x128xf32>
      %c0_19 = arith.constant 0 : index
      %c0_20 = arith.constant 0 : index
      %26 = vector.load %arg6[%c0_19, %c0_20] : memref<8x128xf32, #tpu.memory_space<vmem>>, vector<8x128xf32>
      tpu.vector_store %arg6[%c0_19, %c0_20], %25 {strides = array<i32>} : memref<8x128xf32, #tpu.memory_space<vmem>>, vector<8x128xf32>,
      %27 = vector.shape_cast %23 : vector<1x128xf32> to vector<1x128xf32>
      %28 = vector.broadcast %27 : vector<1x128xf32> to vector<8x128xf32>
      %c0_21 = arith.constant 0 : index
      %c0_22 = arith.constant 0 : index
      %29 = vector.load %arg7[%c0_21, %c0_22] : memref<8x128xf32, #tpu.memory_space<vmem>>, vector<8x128xf32>
      tpu.vector_store %arg7[%c0_21, %c0_22], %28 {strides = array<i32>} : memref<8x128xf32, #tpu.memory_space<vmem>>, vector<8x128xf32>,
    } else {
    }
    return
  }
  func.func @transform_0(%arg0: i32, %arg1: i32) -> (i32, i32) {
    %c0_i32 = arith.constant 0 : i32
    return %arg0, %arg1 : i32, i32
  }
  func.func @transform_1(%arg0: i32, %arg1: i32) -> (i32, i32) {
    %c0_i32 = arith.constant 0 : i32
    %c0_i32_0 = arith.constant 0 : i32
    return %arg1, %c0_i32 : i32, i32
  }
  func.func @transform_2(%arg0: i32, %arg1: i32) -> (i32, i32) {
    %c0_i32 = arith.constant 0 : i32
    %c0_i32_0 = arith.constant 0 : i32
    %c0_i32_1 = arith.constant 0 : i32
    return %c0_i32, %c0_i32_0 : i32, i32
  }
  func.func @transform_3(%arg0: i32, %arg1: i32) -> (i32, i32) {
    %c0_i32 = arith.constant 0 : i32
    %c0_i32_0 = arith.constant 0 : i32
    return %arg0, %c0_i32 : i32, i32
  }
  func.func @transform_4(%arg0: i32, %arg1: i32) -> (i32, i32) {
    %c0_i32 = arith.constant 0 : i32
    %c0_i32_0 = arith.constant 0 : i32
    return %arg0, %c0_i32 : i32, i32
  }
  func.func @transform_5(%arg0: i32, %arg1: i32) -> (i32, i32) {
    %c0_i32 = arith.constant 0 : i32
    %c0_i32_0 = arith.constant 0 : i32
    return %arg0, %c0_i32 : i32, i32
  }
}

module attributes {stable_mosaic.version = 11 : i64} {
  func.func @_bn_relu_kernel(%arg0: i32, %arg1: memref<128x128xf32, #tpu.memory_space<vmem>>, %arg2: memref<1x128xf32, #tpu.memory_space<vmem>>, %arg3: memref<1x128xf32, #tpu.memory_space<vmem>>, %arg4: memref<128x128xf32, #tpu.memory_space<vmem>>) attributes {dimension_semantics = [#tpu.dimension_semantics<parallel>], iteration_bounds = array<i64: 1>, scalar_prefetch = 0 : i64, scratch_operands = 0 : i64, tpu.core_type = #tpu.core_type<tc>, window_params = [{transform_indices = @transform_0, window_bounds = array<i64: 128, 128>}, {pipeline_mode = #tpu.pipeline_mode<synchronous>, transform_indices = @transform_1, window_bounds = array<i64: 1, 128>}, {pipeline_mode = #tpu.pipeline_mode<synchronous>, transform_indices = @transform_2, window_bounds = array<i64: 1, 128>}, {transform_indices = @transform_3, window_bounds = array<i64: 128, 128>}]} {
    %c0 = arith.constant 0 : index
    %c0_0 = arith.constant 0 : index
    %0 = vector.load %arg1[%c0, %c0_0] : memref<128x128xf32, #tpu.memory_space<vmem>>, vector<128x128xf32>
    %c0_1 = arith.constant 0 : index
    %c0_2 = arith.constant 0 : index
    %1 = vector.load %arg2[%c0_1, %c0_2] : memref<1x128xf32, #tpu.memory_space<vmem>>, vector<1x128xf32>
    %2 = vector.broadcast %1 : vector<1x128xf32> to vector<128x128xf32>
    %3 = arith.mulf %0, %2 : vector<128x128xf32>
    %c0_3 = arith.constant 0 : index
    %c0_4 = arith.constant 0 : index
    %4 = vector.load %arg3[%c0_3, %c0_4] : memref<1x128xf32, #tpu.memory_space<vmem>>, vector<1x128xf32>
    %5 = vector.broadcast %4 : vector<1x128xf32> to vector<128x128xf32>
    %6 = arith.addf %3, %5 : vector<128x128xf32>
    %cst = arith.constant 0.000000e+00 : f32
    %7 = vector.broadcast %cst : f32 to vector<128x128xf32>
    %8 = arith.maximumf %6, %7 : vector<128x128xf32>
    %c0_5 = arith.constant 0 : index
    %c0_6 = arith.constant 0 : index
    %9 = vector.load %arg4[%c0_5, %c0_6] : memref<128x128xf32, #tpu.memory_space<vmem>>, vector<128x128xf32>
    tpu.vector_store %arg4[%c0_5, %c0_6], %8 {strides = array<i32>} : memref<128x128xf32, #tpu.memory_space<vmem>>, vector<128x128xf32>,
    return
  }
  func.func @transform_0(%arg0: i32) -> (i32, i32) {
    %c0_i32 = arith.constant 0 : i32
    %c0_i32_0 = arith.constant 0 : i32
    return %arg0, %c0_i32 : i32, i32
  }
  func.func @transform_1(%arg0: i32) -> (i32, i32) {
    %c0_i32 = arith.constant 0 : i32
    %c0_i32_0 = arith.constant 0 : i32
    %c0_i32_1 = arith.constant 0 : i32
    return %c0_i32, %c0_i32_0 : i32, i32
  }
  func.func @transform_2(%arg0: i32) -> (i32, i32) {
    %c0_i32 = arith.constant 0 : i32
    %c0_i32_0 = arith.constant 0 : i32
    %c0_i32_1 = arith.constant 0 : i32
    return %c0_i32, %c0_i32_0 : i32, i32
  }
  func.func @transform_3(%arg0: i32) -> (i32, i32) {
    %c0_i32 = arith.constant 0 : i32
    %c0_i32_0 = arith.constant 0 : i32
    return %arg0, %c0_i32 : i32, i32
  }
}

</mosaic_0001>

<llo_original>
// kernel: yadapt_pixel_shuffle.2
$region0: #{yadapt_pixel_shuffle.2}
  #allocation0 [shape = 'u32[]', space=smem, size = 0x4, offset = 0x4, fixed_abs, tag = 'smem constant byte address 0x4 - core index']
  #allocation1 [shape = 'u32[144,128]{1,0:T(1,128)}', space=vmem, size = 0x12000, scoped, tag = 'internal scratch']
  #allocation2 [shape = 'f32[128,128]{1,0:T(8,128)}', space=vmem, size = 0x10000, scoped, tag = 'scratch operand']
  %s0 = inlined_call_operand.hbm [shape: f32[128,64], index: 0, kind: input, shape index: {}]
  %s1 = inlined_call_operand.hbm [shape: f32[64,128], index: 1, kind: input, shape index: {}]
  %s2 = inlined_call_operand.vmem [shape: f32[1,128], index: 2, kind: input, shape index: {}]
  %s3 = inlined_call_operand.vmem [shape: f32[128,128], index: 3, kind: output, shape index: {0}]
  %s4 = inlined_call_operand.vmem [shape: f32[8,128], index: 4, kind: output, shape index: {1}]
  %s5 = inlined_call_operand.vmem [shape: f32[8,128], index: 5, kind: output, shape index: {2}]
  %6 = xla_tuple %s3, %s4, %s5
  %s7 = sld [smem:[#allocation0]]
  $region54: #{yadapt_pixel_shuffle.2} parent=0
    _
  %s9 = ssub.s32 1, %s7
  %s10 = scalar_select 0, %s9, %s7
  $region1: #{yadapt_pixel_shuffle.2} parent=0
    #allocation3 [shape = 'u8[65536]{0}', space=vmem, size = 0x10000, scoped, tag = 'input window, operand 0, single buffered']
    #allocation4 [shape = 's32[1]{0}', space=sflag, size = 0x4, scoped, tag = 'scoped memory for yadapt_pixel_shuffle.2']
    #allocation5 [shape = 'u8[32768]{0}', space=vmem, size = 0x8000, scoped, tag = 'input window, operand 1, single buffered']
    #allocation6 [shape = 's32[1]{0}', space=sflag, size = 0x4, scoped, tag = 'scoped memory for yadapt_pixel_shuffle.2']
    %11 = vsyncpa [#allocation4], 0
    %12 = vsyncpa [#allocation6], 0
    // Predicated region
    $region2: #{yadapt_pixel_shuffle.2} parent=1 // pred_check
      _
    $region3: #{yadapt_pixel_shuffle.2} parent=1 // pred_check_branch
      %14 = sbr.rel (0) target = $region5
    $region4: #{yadapt_pixel_shuffle.2} parent=1 // pred_region
      %s16 = ssub.s32 2048, 2048
      %17 = vsyncadd [#allocation4], %s16
      %s18 = sshll.u32 [#allocation3], 4
      %s19 = int_to_ptr.vmem [resolvable:$true] %s18
      %24 = dma.hbm_to_vmem [thread:$0]  %s0, 2048, %s19, [#allocation4], 128, 128, 8
    $region5: #{yadapt_pixel_shuffle.2} parent=1 // pred_fallthru
      _
    // Predicated region
    $region6: #{yadapt_pixel_shuffle.2} parent=1 // pred_check
      _
    $region7: #{yadapt_pixel_shuffle.2} parent=1 // pred_check_branch
      %26 = sbr.rel (0) target = $region9
    $region8: #{yadapt_pixel_shuffle.2} parent=1 // pred_region
      %s28 = ssub.s32 1024, 1024
      %29 = vsyncadd [#allocation6], %s28
      %s30 = sshll.u32 [#allocation5], 4
      %s31 = int_to_ptr.vmem [resolvable:$true] %s30
      %36 = dma.hbm_to_vmem [thread:$0]  %s1, 1024, %s31, [#allocation6], 128, 128, 8
    $region9: #{yadapt_pixel_shuffle.2} parent=1 // pred_fallthru
      _
    // Predicated region
    $region10: #{yadapt_pixel_shuffle.2} parent=1 // pred_check
      _
    $region11: #{yadapt_pixel_shuffle.2} parent=1 // pred_check_branch
      %38 = sbr.rel (0) target = $region13
    $region12: #{yadapt_pixel_shuffle.2} parent=1 // pred_region
      _
    $region13: #{yadapt_pixel_shuffle.2} parent=1 // pred_fallthru
      _
    // Predicated region
    $region14: #{yadapt_pixel_shuffle.2} parent=1 // pred_check
      _
    $region15: #{yadapt_pixel_shuffle.2} parent=1 // pred_check_branch
      %40 = sbr.rel (0) target = $region17
    $region16: #{yadapt_pixel_shuffle.2} parent=1 // pred_region
      %41 = dma.done [#allocation4], 2048
    $region17: #{yadapt_pixel_shuffle.2} parent=1 // pred_fallthru
      _
    // Predicated region
    $region18: #{yadapt_pixel_shuffle.2} parent=1 // pred_check
      _
    $region19: #{yadapt_pixel_shuffle.2} parent=1 // pred_check_branch
      %43 = sbr.rel (0) target = $region21
    $region20: #{yadapt_pixel_shuffle.2} parent=1 // pred_region
      %44 = dma.done [#allocation6], 1024
    $region21: #{yadapt_pixel_shuffle.2} parent=1 // pred_fallthru
      _
    %p45 = scmp.eq.s32.totalorder 0, 0
    // Predicated region
    $region22: #{yadapt_pixel_shuffle.2} parent=1 // pred_check
      %p46 = pneg %p45
    $region23: #{yadapt_pixel_shuffle.2} parent=1 // pred_check_branch
      %48 = sbr.rel (%p46) target = $region25
    $region24: #{yadapt_pixel_shuffle.2} parent=1 // pred_region
      %49 = vst [vmem:[#allocation2] sm:$0xff] 0.0
      %50 = vst [vmem:[#allocation2 + $0x8] sm:$0xff] 0.0
      %51 = vst [vmem:[#allocation2 + $0x10] sm:$0xff] 0.0
      %52 = vst [vmem:[#allocation2 + $0x18] sm:$0xff] 0.0
      %53 = vst [vmem:[#allocation2 + $0x20] sm:$0xff] 0.0
      %54 = vst [vmem:[#allocation2 + $0x28] sm:$0xff] 0.0
      %55 = vst [vmem:[#allocation2 + $0x30] sm:$0xff] 0.0
      %56 = vst [vmem:[#allocation2 + $0x38] sm:$0xff] 0.0
      %57 = vst [vmem:[#allocation2 + $0x40] sm:$0xff] 0.0
      %58 = vst [vmem:[#allocation2 + $0x48] sm:$0xff] 0.0
      %59 = vst [vmem:[#allocation2 + $0x50] sm:$0xff] 0.0
      %60 = vst [vmem:[#allocation2 + $0x58] sm:$0xff] 0.0
      %61 = vst [vmem:[#allocation2 + $0x60] sm:$0xff] 0.0
      %62 = vst [vmem:[#allocation2 + $0x68] sm:$0xff] 0.0
      %63 = vst [vmem:[#allocation2 + $0x70] sm:$0xff] 0.0
      %64 = vst [vmem:[#allocation2 + $0x78] sm:$0xff] 0.0
    $region25: #{yadapt_pixel_shuffle.2} parent=1 // pred_fallthru
      _
    %v65 = vld [vmem:[#allocation2] sm:$0xff]
    %v66 = vld [vmem:[#allocation2 + $0x8] sm:$0xff]
    %v67 = vld [vmem:[#allocation2 + $0x10] sm:$0xff]
    %v68 = vld [vmem:[#allocation2 + $0x18] sm:$0xff]
    %v69 = vld [vmem:[#allocation2 + $0x20] sm:$0xff]
    %v70 = vld [vmem:[#allocation2 + $0x28] sm:$0xff]
    %v71 = vld [vmem:[#allocation2 + $0x30] sm:$0xff]
    %v72 = vld [vmem:[#allocation2 + $0x38] sm:$0xff]
    %v73 = vld [vmem:[#allocation2 + $0x40] sm:$0xff]
    %v74 = vld [vmem:[#allocation2 + $0x48] sm:$0xff]
    %v75 = vld [vmem:[#allocation2 + $0x50] sm:$0xff]
    %v76 = vld [vmem:[#allocation2 + $0x58] sm:$0xff]
    %v77 = vld [vmem:[#allocation2 + $0x60] sm:$0xff]
    %v78 = vld [vmem:[#allocation2 + $0x68] sm:$0xff]
    %v79 = vld [vmem:[#allocation2 + $0x70] sm:$0xff]
    %v80 = vld [vmem:[#allocation2 + $0x78] sm:$0xff]
    %v81 = vld [vmem:[#allocation3] sm:$0xff]
    %v82 = vld [vmem:[#allocation3 + $0x8] sm:$0xff]
    %v83 = vld [vmem:[#allocation3 + $0x10] sm:$0xff]
    %v84 = vld [vmem:[#allocation3 + $0x18] sm:$0xff]
    %v85 = vld [vmem:[#allocation3 + $0x20] sm:$0xff]
    %v86 = vld [vmem:[#allocation3 + $0x28] sm:$0xff]
    %v87 = vld [vmem:[#allocation3 + $0x30] sm:$0xff]
    %v88 = vld [vmem:[#allocation3 + $0x38] sm:$0xff]
    %v89 = vld [vmem:[#allocation3 + $0x40] sm:$0xff]
    %v90 = vld [vmem:[#allocation3 + $0x48] sm:$0xff]
    %v91 = vld [vmem:[#allocation3 + $0x50] sm:$0xff]
    %v92 = vld [vmem:[#allocation3 + $0x58] sm:$0xff]
    %v93 = vld [vmem:[#allocation3 + $0x60] sm:$0xff]
    %v94 = vld [vmem:[#allocation3 + $0x68] sm:$0xff]
    %v95 = vld [vmem:[#allocation3 + $0x70] sm:$0xff]
    %v96 = vld [vmem:[#allocation3 + $0x78] sm:$0xff]
    %v97 = vld [vmem:[#allocation5] sm:$0xff]
    %v98 = vld [vmem:[#allocation5 + $0x8] sm:$0xff]
    %v99 = vld [vmem:[#allocation5 + $0x10] sm:$0xff]
    %v100 = vld [vmem:[#allocation5 + $0x18] sm:$0xff]
    %v101 = vld [vmem:[#allocation5 + $0x20] sm:$0xff]
    %v102 = vld [vmem:[#allocation5 + $0x28] sm:$0xff]
    %v103 = vld [vmem:[#allocation5 + $0x30] sm:$0xff]
    %v104 = vld [vmem:[#allocation5 + $0x38] sm:$0xff]
    %vm105 = vcmask 523264
    %v107 = vsel %vm105, %v81, 0
    %v110 = vsel %vm105, %v82, 0
    %v113 = vsel %vm105, %v83, 0
    %v116 = vsel %vm105, %v84, 0
    %v119 = vsel %vm105, %v85, 0
    %v122 = vsel %vm105, %v86, 0
    %v125 = vsel %vm105, %v87, 0
    %v128 = vsel %vm105, %v88, 0
    %v131 = vsel %vm105, %v89, 0
    %v134 = vsel %vm105, %v90, 0
    %v137 = vsel %vm105, %v91, 0
    %v140 = vsel %vm105, %v92, 0
    %v143 = vsel %vm105, %v93, 0
    %v146 = vsel %vm105, %v94, 0
    %v149 = vsel %vm105, %v95, 0
    %v152 = vsel %vm105, %v96, 0
    %154 = vmatprep.subr.mxu0 0.0
    %155 = vmatpush1.msra.mxu0 %v97
    %156 = vmatprep.subr.mxu0 0.0
    %157 = vmatpush1.msra.mxu0 %v98
    %158 = vmatprep.subr.mxu0 0.0
    %159 = vmatpush1.msra.mxu0 %v99
    %160 = vmatprep.subr.mxu0 0.0
    %161 = vmatpush1.msra.mxu0 %v100
    %162 = vmatprep.subr.mxu0 0.0
    %163 = vmatpush1.msra.mxu0 %v101
    %164 = vmatprep.subr.mxu0 0.0
    %165 = vmatpush1.msra.mxu0 %v102
    %166 = vmatprep.subr.mxu0 0.0
    %167 = vmatpush1.msra.mxu0 %v103
    %168 = vmatprep.subr.mxu0 0.0
    %169 = vmatpush1.msra.mxu0 %v104
    %170 = vmatprep.subr.mxu0 0.0
    %171 = vmatpush1.msra.mxu0 0.0
    %172 = vmatprep.subr.mxu0 0.0
    %173 = vmatpush1.msra.mxu0 0.0
    %174 = vmatprep.subr.mxu0 0.0
    %175 = vmatpush1.msra.mxu0 0.0
    %176 = vmatprep.subr.mxu0 0.0
    %177 = vmatpush1.msra.mxu0 0.0
    %178 = vmatprep.subr.mxu0 0.0
    %179 = vmatpush1.msra.mxu0 0.0
    %180 = vmatprep.subr.mxu0 0.0
    %181 = vmatpush1.msra.mxu0 0.0
    %182 = vmatprep.subr.mxu0 0.0
    %183 = vmatpush1.msra.mxu0 0.0
    %184 = vmatprep.subr.mxu0 0.0
    %185 = vmatpush1.msra.mxu0 0.0
    %186 = vmatprep.subr.mxu0 0.0
    %187 = vmatpush1.msra.mxu0 0.0
    %188 = vmatprep.subr.mxu0 0.0
    %189 = vmatpush1.msra.mxu0 0.0
    %190 = vmatprep.subr.mxu0 0.0
    %191 = vmatpush1.msra.mxu0 0.0
    %192 = vmatprep.subr.mxu0 0.0
    %193 = vmatpush1.msra.mxu0 0.0
    %194 = vmatprep.subr.mxu0 0.0
    %195 = vmatpush1.msra.mxu0 0.0
    %196 = vmatprep.subr.mxu0 0.0
    %197 = vmatpush1.msra.mxu0 0.0
    %198 = vmatprep.subr.mxu0 0.0
    %199 = vmatpush1.msra.mxu0 0.0
    %200 = vmatprep.subr.mxu0 0.0
    %201 = vmatpush1.msra.mxu0 0.0
    %202 = vmatprep.subr.mxu0 0.0
    %203 = vmatpush1.msra.mxu0 0.0
    %204 = vmatprep.subr.mxu0 0.0
    %205 = vmatpush1.msra.mxu0 0.0
    %206 = vmatprep.subr.mxu0 0.0
    %207 = vmatpush1.msra.mxu0 0.0
    %208 = vmatprep.subr.mxu0 0.0
    %209 = vmatpush1.msra.mxu0 0.0
    %210 = vmatprep.subr.mxu0 0.0
    %211 = vmatpush1.msra.mxu0 0.0
    %212 = vmatprep.subr.mxu0 0.0
    %213 = vmatpush1.msra.mxu0 0.0
    %214 = vmatprep.subr.mxu0 0.0
    %215 = vmatpush1.msra.mxu0 0.0
    %216 = vmatprep.subr.mxu0 0.0
    %217 = vmatpush1.msra.mxu0 0.0
    %218 = vmatprep.mubr.f32.mxu0 0.0
    %219 = vmatmul.mubr.f32.gmra.mrb[0].mxu0 %v107
    %v220 = vpop.f32.mrb[0].mxu0
    %v221 = vadd.f32 0.0, %v220
    %v222 = vpop.f32.mrb[0].mxu0
    %223 = vmatprep.mubr.f32.mxu0 0.0
    %224 = vmatmul.mubr.f32.gmra.mrb[0].mxu0 %v110
    %v225 = vpop.f32.mrb[0].mxu0
    %v226 = vadd.f32 0.0, %v225
    %v227 = vpop.f32.mrb[0].mxu0
    %228 = vmatprep.mubr.f32.mxu0 0.0
    %229 = vmatmul.mubr.f32.gmra.mrb[0].mxu0 %v113
    %v230 = vpop.f32.mrb[0].mxu0
    %v231 = vadd.f32 0.0, %v230
    %v232 = vpop.f32.mrb[0].mxu0
    %233 = vmatprep.mubr.f32.mxu0 0.0
    %234 = vmatmul.mubr.f32.gmra.mrb[0].mxu0 %v116
    %v235 = vpop.f32.mrb[0].mxu0
    %v236 = vadd.f32 0.0, %v235
    %v237 = vpop.f32.mrb[0].mxu0
    %238 = vmatprep.mubr.f32.mxu0 0.0
    %239 = vmatmul.mubr.f32.gmra.mrb[0].mxu0 %v119
    %v240 = vpop.f32.mrb[0].mxu0
    %v241 = vadd.f32 0.0, %v240
    %v242 = vpop.f32.mrb[0].mxu0
    %243 = vmatprep.mubr.f32.mxu0 0.0
    %244 = vmatmul.mubr.f32.gmra.mrb[0].mxu0 %v122
    %v245 = vpop.f32.mrb[0].mxu0
    %v246 = vadd.f32 0.0, %v245
    %v247 = vpop.f32.mrb[0].mxu0
    %248 = vmatprep.mubr.f32.mxu0 0.0
    %249 = vmatmul.mubr.f32.gmra.mrb[0].mxu0 %v125
    %v250 = vpop.f32.mrb[0].mxu0
    %v251 = vadd.f32 0.0, %v250
    %v252 = vpop.f32.mrb[0].mxu0
    %253 = vmatprep.mubr.f32.mxu0 0.0
    %254 = vmatmul.mubr.f32.gmra.mrb[0].mxu0 %v128
    %v255 = vpop.f32.mrb[0].mxu0
    %v256 = vadd.f32 0.0, %v255
    %v257 = vpop.f32.mrb[0].mxu0
    %258 = vmatprep.mubr.f32.mxu0 0.0
    %259 = vmatmul.mubr.f32.gmra.mrb[0].mxu0 %v131
    %v260 = vpop.f32.mrb[0].mxu0
    %v261 = vadd.f32 0.0, %v260
    %v262 = vpop.f32.mrb[0].mxu0
    %263 = vmatprep.mubr.f32.mxu0 0.0
    %264 = vmatmul.mubr.f32.gmra.mrb[0].mxu0 %v134
    %v265 = vpop.f32.mrb[0].mxu0
    %v266 = vadd.f32 0.0, %v265
    %v267 = vpop.f32.mrb[0].mxu0
    %268 = vmatprep.mubr.f32.mxu0 0.0
    %269 = vmatmul.mubr.f32.gmra.mrb[0].mxu0 %v137
    %v270 = vpop.f32.mrb[0].mxu0
    %v271 = vadd.f32 0.0, %v270
    %v272 = vpop.f32.mrb[0].mxu0
    %273 = vmatprep.mubr.f32.mxu0 0.0
    %274 = vmatmul.mubr.f32.gmra.mrb[0].mxu0 %v140
    %v275 = vpop.f32.mrb[0].mxu0
    %v276 = vadd.f32 0.0, %v275
    %v277 = vpop.f32.mrb[0].mxu0
    %278 = vmatprep.mubr.f32.mxu0 0.0
    %279 = vmatmul.mubr.f32.gmra.mrb[0].mxu0 %v143
    %v280 = vpop.f32.mrb[0].mxu0
    %v281 = vadd.f32 0.0, %v280
    %v282 = vpop.f32.mrb[0].mxu0
    %283 = vmatprep.mubr.f32.mxu0 0.0
    %284 = vmatmul.mubr.f32.gmra.mrb[0].mxu0 %v146
    %v285 = vpop.f32.mrb[0].mxu0
    %v286 = vadd.f32 0.0, %v285
    %v287 = vpop.f32.mrb[0].mxu0
    %288 = vmatprep.mubr.f32.mxu0 0.0
    %289 = vmatmul.mubr.f32.gmra.mrb[0].mxu0 %v149
    %v290 = vpop.f32.mrb[0].mxu0
    %v291 = vadd.f32 0.0, %v290
    %v292 = vpop.f32.mrb[0].mxu0
    %293 = vmatprep.mubr.f32.mxu0 0.0
    %294 = vmatmul.mubr.f32.gmra.mrb[0].mxu0 %v152
    %v295 = vpop.f32.mrb[0].mxu0
    %v296 = vadd.f32 0.0, %v295
    %v297 = vpop.f32.mrb[0].mxu0
    %298 = vdwg.mxu0
    %v299 = vadd.f32 %v65, %v221
    %v300 = vadd.f32 %v66, %v226
    %v301 = vadd.f32 %v67, %v231
    %v302 = vadd.f32 %v68, %v236
    %v303 = vadd.f32 %v69, %v241
    %v304 = vadd.f32 %v70, %v246
    %v305 = vadd.f32 %v71, %v251
    %v306 = vadd.f32 %v72, %v256
    %v307 = vadd.f32 %v73, %v261
    %v308 = vadd.f32 %v74, %v266
    %v309 = vadd.f32 %v75, %v271
    %v310 = vadd.f32 %v76, %v276
    %v311 = vadd.f32 %v77, %v281
    %v312 = vadd.f32 %v78, %v286
    %v313 = vadd.f32 %v79, %v291
    %v314 = vadd.f32 %v80, %v296
    %315 = vst [vmem:[#allocation2] sm:$0xff] %v299
    %316 = vst [vmem:[#allocation2 + $0x8] sm:$0xff] %v300
    %317 = vst [vmem:[#allocation2 + $0x10] sm:$0xff] %v301
    %318 = vst [vmem:[#allocation2 + $0x18] sm:$0xff] %v302
    %319 = vst [vmem:[#allocation2 + $0x20] sm:$0xff] %v303
    %320 = vst [vmem:[#allocation2 + $0x28] sm:$0xff] %v304
    %321 = vst [vmem:[#allocation2 + $0x30] sm:$0xff] %v305
    %322 = vst [vmem:[#allocation2 + $0x38] sm:$0xff] %v306
    %323 = vst [vmem:[#allocation2 + $0x40] sm:$0xff] %v307
    %324 = vst [vmem:[#allocation2 + $0x48] sm:$0xff] %v308
    %325 = vst [vmem:[#allocation2 + $0x50] sm:$0xff] %v309
    %326 = vst [vmem:[#allocation2 + $0x58] sm:$0xff] %v310
    %327 = vst [vmem:[#allocation2 + $0x60] sm:$0xff] %v311
    %328 = vst [vmem:[#allocation2 + $0x68] sm:$0xff] %v312
    %329 = vst [vmem:[#allocation2 + $0x70] sm:$0xff] %v313
    %330 = vst [vmem:[#allocation2 + $0x78] sm:$0xff] %v314
    // Predicated region
    $region26: #{yadapt_pixel_shuffle.2} parent=1 // pred_check
      %p331 = pneg %p45
    $region27: #{yadapt_pixel_shuffle.2} parent=1 // pred_check_branch
      %333 = sbr.rel (%p331) target = $region29
    $region28: #{yadapt_pixel_shuffle.2} parent=1 // pred_region
      %v334 = vld [vmem:[#allocation2] sm:$0xff]
      %v335 = vld [vmem:[#allocation2 + $0x8] sm:$0xff]
      %v336 = vld [vmem:[#allocation2 + $0x10] sm:$0xff]
      %v337 = vld [vmem:[#allocation2 + $0x18] sm:$0xff]
      %v338 = vld [vmem:[#allocation2 + $0x20] sm:$0xff]
      %v339 = vld [vmem:[#allocation2 + $0x28] sm:$0xff]
      %v340 = vld [vmem:[#allocation2 + $0x30] sm:$0xff]
      %v341 = vld [vmem:[#allocation2 + $0x38] sm:$0xff]
      %v342 = vld [vmem:[#allocation2 + $0x40] sm:$0xff]
      %v343 = vld [vmem:[#allocation2 + $0x48] sm:$0xff]
      %v344 = vld [vmem:[#allocation2 + $0x50] sm:$0xff]
      %v345 = vld [vmem:[#allocation2 + $0x58] sm:$0xff]
      %v346 = vld [vmem:[#allocation2 + $0x60] sm:$0xff]
      %v347 = vld [vmem:[#allocation2 + $0x68] sm:$0xff]
      %v348 = vld [vmem:[#allocation2 + $0x70] sm:$0xff]
      %v349 = vld [vmem:[#allocation2 + $0x78] sm:$0xff]
      %v350 = vld [vmem:[%s2] sm:$0x1]
      %v352 = vlaneseq
      %v353 = vshrl.u32 %v352, 7
      %v354 = vsub.s32 0, %v353
      %v355 = vrot.slane %v350, %v354
      %v357 = vadd.f32 %v334, %v355
      %v358 = vadd.f32 %v335, %v355
      %v359 = vadd.f32 %v336, %v355
      %v360 = vadd.f32 %v337, %v355
      %v361 = vadd.f32 %v338, %v355
      %v362 = vadd.f32 %v339, %v355
      %v363 = vadd.f32 %v340, %v355
      %v364 = vadd.f32 %v341, %v355
      %v365 = vadd.f32 %v342, %v355
      %v366 = vadd.f32 %v343, %v355
      %v367 = vadd.f32 %v344, %v355
      %v368 = vadd.f32 %v345, %v355
      %v369 = vadd.f32 %v346, %v355
      %v370 = vadd.f32 %v347, %v355
      %v371 = vadd.f32 %v348, %v355
      %v372 = vadd.f32 %v349, %v355
      %v373 = vmax.f32 %v357, 0.0
      %v374 = vmax.f32 %v358, 0.0
      %v375 = vmax.f32 %v359, 0.0
      %v376 = vmax.f32 %v360, 0.0
      %v377 = vmax.f32 %v361, 0.0
      %v378 = vmax.f32 %v362, 0.0
      %v379 = vmax.f32 %v363, 0.0
      %v380 = vmax.f32 %v364, 0.0
      %v381 = vmax.f32 %v365, 0.0
      %v382 = vmax.f32 %v366, 0.0
      %v383 = vmax.f32 %v367, 0.0
      %v384 = vmax.f32 %v368, 0.0
      %v385 = vmax.f32 %v369, 0.0
      %v386 = vmax.f32 %v370, 0.0
      %v387 = vmax.f32 %v371, 0.0
      %v388 = vmax.f32 %v372, 0.0
      %389 = vst [vmem:[%s3] sm:$0xff] %v373
      %390 = vst [vmem:[%s3 + $0x8] sm:$0xff] %v374
      %391 = vst [vmem:[%s3 + $0x10] sm:$0xff] %v375
      %392 = vst [vmem:[%s3 + $0x18] sm:$0xff] %v376
      %393 = vst [vmem:[%s3 + $0x20] sm:$0xff] %v377
      %394 = vst [vmem:[%s3 + $0x28] sm:$0xff] %v378
      %395 = vst [vmem:[%s3 + $0x30] sm:$0xff] %v379
      %396 = vst [vmem:[%s3 + $0x38] sm:$0xff] %v380
      %397 = vst [vmem:[%s3 + $0x40] sm:$0xff] %v381
      %398 = vst [vmem:[%s3 + $0x48] sm:$0xff] %v382
      %399 = vst [vmem:[%s3 + $0x50] sm:$0xff] %v383
      %400 = vst [vmem:[%s3 + $0x58] sm:$0xff] %v384
      %401 = vst [vmem:[%s3 + $0x60] sm:$0xff] %v385
      %402 = vst [vmem:[%s3 + $0x68] sm:$0xff] %v386
      %403 = vst [vmem:[%s3 + $0x70] sm:$0xff] %v387
      %404 = vst [vmem:[%s3 + $0x78] sm:$0xff] %v388
      %v405 = vadd.f32 %v373, %v374
      %v406 = vadd.f32 %v405, %v375
      %v407 = vadd.f32 %v406, %v376
      %v408 = vadd.f32 %v407, %v377
      %v409 = vadd.f32 %v408, %v378
      %v410 = vadd.f32 %v409, %v379
      %v411 = vadd.f32 %v410, %v380
      %v412 = vadd.f32 %v411, %v381
      %v413 = vadd.f32 %v412, %v382
      %v414 = vadd.f32 %v413, %v383
      %v415 = vadd.f32 %v414, %v384
      %v416 = vadd.f32 %v415, %v385
      %v417 = vadd.f32 %v416, %v386
      %v418 = vadd.f32 %v417, %v387
      %v419 = vadd.f32 %v418, %v388
      %v420 = vrot.slane %v419, 4
      %v421 = vadd.f32 %v419, %v420
      %v422 = vrot.slane %v421, 2
      %v423 = vadd.f32 %v421, %v422
      %v424 = vrot.slane %v423, 1
      %v425 = vadd.f32 %v423, %v424
      %v426 = vmul.f32 %v373, %v373
      %v427 = vmul.f32 %v374, %v374
      %v428 = vmul.f32 %v375, %v375
      %v429 = vmul.f32 %v376, %v376
      %v430 = vmul.f32 %v377, %v377
      %v431 = vmul.f32 %v378, %v378
      %v432 = vmul.f32 %v379, %v379
      %v433 = vmul.f32 %v380, %v380
      %v434 = vmul.f32 %v381, %v381
      %v435 = vmul.f32 %v382, %v382
      %v436 = vmul.f32 %v383, %v383
      %v437 = vmul.f32 %v384, %v384
      %v438 = vmul.f32 %v385, %v385
      %v439 = vmul.f32 %v386, %v386
      %v440 = vmul.f32 %v387, %v387
      %v441 = vmul.f32 %v388, %v388
      %v442 = vadd.f32 %v426, %v427
      %v443 = vadd.f32 %v442, %v428
      %v444 = vadd.f32 %v443, %v429
      %v445 = vadd.f32 %v444, %v430
      %v446 = vadd.f32 %v445, %v431
      %v447 = vadd.f32 %v446, %v432
      %v448 = vadd.f32 %v447, %v433
      %v449 = vadd.f32 %v448, %v434
      %v450 = vadd.f32 %v449, %v435
      %v451 = vadd.f32 %v450, %v436
      %v452 = vadd.f32 %v451, %v437
      %v453 = vadd.f32 %v452, %v438
      %v454 = vadd.f32 %v453, %v439
      %v455 = vadd.f32 %v454, %v440
      %v456 = vadd.f32 %v455, %v441
      %v457 = vrot.slane %v456, 4
      %v458 = vadd.f32 %v456, %v457
      %v459 = vrot.slane %v458, 2
      %v460 = vadd.f32 %v458, %v459
      %v461 = vrot.slane %v460, 1
      %v462 = vadd.f32 %v460, %v461
      %463 = vst [vmem:[%s4] sm:$0xff] %v425
      %464 = vst [vmem:[%s5] sm:$0xff] %v462
    $region29: #{yadapt_pixel_shuffle.2} parent=1 // pred_fallthru
      _
    // Predicated region
    $region30: #{yadapt_pixel_shuffle.2} parent=1 // pred_check
      _
    $region31: #{yadapt_pixel_shuffle.2} parent=1 // pred_check_branch
      %466 = sbr.rel (0) target = $region33
    $region32: #{yadapt_pixel_shuffle.2} parent=1 // pred_region
      _
    $region33: #{yadapt_pixel_shuffle.2} parent=1 // pred_fallthru
      _
    // Predicated region
    $region34: #{yadapt_pixel_shuffle.2} parent=1 // pred_check
      _
    $region35: #{yadapt_pixel_shuffle.2} parent=1 // pred_check_branch
      %468 = sbr.rel (0) target = $region37
    $region36: #{yadapt_pixel_shuffle.2} parent=1 // pred_region
      _
    $region37: #{yadapt_pixel_shuffle.2} parent=1 // pred_fallthru
      _
    // Predicated region
    $region38: #{yadapt_pixel_shuffle.2} parent=1 // pred_check
      _
    $region39: #{yadapt_pixel_shuffle.2} parent=1 // pred_check_branch
      %470 = sbr.rel (0) target = $region41
    $region40: #{yadapt_pixel_shuffle.2} parent=1 // pred_region
      _
    $region41: #{yadapt_pixel_shuffle.2} parent=1 // pred_fallthru
      _
    // Predicated region
    $region42: #{yadapt_pixel_shuffle.2} parent=1 // pred_check
      _
    $region43: #{yadapt_pixel_shuffle.2} parent=1 // pred_check_branch
      %472 = sbr.rel (0) target = $region45
    $region44: #{yadapt_pixel_shuffle.2} parent=1 // pred_region
      _
    $region45: #{yadapt_pixel_shuffle.2} parent=1 // pred_fallthru
      _
    // Predicated region
    $region46: #{yadapt_pixel_shuffle.2} parent=1 // pred_check
      _
    $region47: #{yadapt_pixel_shuffle.2} parent=1 // pred_check_branch
      %474 = sbr.rel (0) target = $region49
    $region48: #{yadapt_pixel_shuffle.2} parent=1 // pred_region
      _
    $region49: #{yadapt_pixel_shuffle.2} parent=1 // pred_fallthru
      _
    // Predicated region
    $region50: #{yadapt_pixel_shuffle.2} parent=1 // pred_check
      _
    $region51: #{yadapt_pixel_shuffle.2} parent=1 // pred_check_branch
      %476 = sbr.rel (0) target = $region53
    $region52: #{yadapt_pixel_shuffle.2} parent=1 // pred_region
      _
    $region53: #{yadapt_pixel_shuffle.2} parent=1 // pred_fallthru
      _
    %477 = vsyncpa [#allocation4], 1
    %478 = vsyncpa [#allocation6], 1

// kernel: yadapt_pixel_shuffle.3
$region0: #{yadapt_pixel_shuffle.3}
  #allocation0 [shape = 'u32[]', space=smem, size = 0x4, offset = 0x4, fixed_abs, tag = 'smem constant byte address 0x4 - core index']
  #allocation1 [shape = 'u32[144,128]{1,0:T(1,128)}', space=vmem, size = 0x12000, scoped, tag = 'internal scratch']
  %s0 = inlined_call_operand.vmem [shape: f32[128,128], index: 0, kind: input, shape index: {}]
  %s1 = inlined_call_operand.vmem [shape: f32[1,128], index: 1, kind: input, shape index: {}]
  %s2 = inlined_call_operand.vmem [shape: f32[1,128], index: 2, kind: input, shape index: {}]
  %s3 = inlined_call_operand.vmem [shape: f32[128,128], index: 3, kind: output, shape index: {}]
  %s4 = sld [smem:[#allocation0]]
  $region22: #{yadapt_pixel_shuffle.3} parent=0
    _
  %s6 = ssub.s32 1, %s4
  %s7 = scalar_select 0, %s6, %s4
  // Predicated region
  $region2: #{yadapt_pixel_shuffle.3} parent=0 // pred_check
    _
  $region3: #{yadapt_pixel_shuffle.3} parent=0 // pred_check_branch
    %9 = sbr.rel (0) target = $region5
  $region4: #{yadapt_pixel_shuffle.3} parent=0 // pred_region
    _
  $region5: #{yadapt_pixel_shuffle.3} parent=0 // pred_fallthru
    _
  // Predicated region
  $region6: #{yadapt_pixel_shuffle.3} parent=0 // pred_check
    _
  $region7: #{yadapt_pixel_shuffle.3} parent=0 // pred_check_branch
    %11 = sbr.rel (0) target = $region9
  $region8: #{yadapt_pixel_shuffle.3} parent=0 // pred_region
    _
  $region9: #{yadapt_pixel_shuffle.3} parent=0 // pred_fallthru
    _
  // Predicated region
  $region10: #{yadapt_pixel_shuffle.3} parent=0 // pred_check
    _
  $region11: #{yadapt_pixel_shuffle.3} parent=0 // pred_check_branch
    %13 = sbr.rel (0) target = $region13
  $region12: #{yadapt_pixel_shuffle.3} parent=0 // pred_region
    _
  $region13: #{yadapt_pixel_shuffle.3} parent=0 // pred_fallthru
    _
  %v14 = vld [vmem:[%s0] sm:$0xff]
  %v15 = vld [vmem:[%s0 + $0x8] sm:$0xff]
  %v16 = vld [vmem:[%s0 + $0x10] sm:$0xff]
  %v17 = vld [vmem:[%s0 + $0x18] sm:$0xff]
  %v18 = vld [vmem:[%s0 + $0x20] sm:$0xff]
  %v19 = vld [vmem:[%s0 + $0x28] sm:$0xff]
  %v20 = vld [vmem:[%s0 + $0x30] sm:$0xff]
  %v21 = vld [vmem:[%s0 + $0x38] sm:$0xff]
  %v22 = vld [vmem:[%s0 + $0x40] sm:$0xff]
  %v23 = vld [vmem:[%s0 + $0x48] sm:$0xff]
  %v24 = vld [vmem:[%s0 + $0x50] sm:$0xff]
  %v25 = vld [vmem:[%s0 + $0x58] sm:$0xff]
  %v26 = vld [vmem:[%s0 + $0x60] sm:$0xff]
  %v27 = vld [vmem:[%s0 + $0x68] sm:$0xff]
  %v28 = vld [vmem:[%s0 + $0x70] sm:$0xff]
  %v29 = vld [vmem:[%s0 + $0x78] sm:$0xff]
  %v30 = vld [vmem:[%s1] sm:$0x1]
  %v32 = vlaneseq
  %v33 = vshrl.u32 %v32, 7
  %v34 = vsub.s32 0, %v33
  %v35 = vrot.slane %v30, %v34
  %v37 = vmul.f32 %v14, %v35
  %v38 = vmul.f32 %v15, %v35
  %v39 = vmul.f32 %v16, %v35
  %v40 = vmul.f32 %v17, %v35
  %v41 = vmul.f32 %v18, %v35
  %v42 = vmul.f32 %v19, %v35
  %v43 = vmul.f32 %v20, %v35
  %v44 = vmul.f32 %v21, %v35
  %v45 = vmul.f32 %v22, %v35
  %v46 = vmul.f32 %v23, %v35
  %v47 = vmul.f32 %v24, %v35
  %v48 = vmul.f32 %v25, %v35
  %v49 = vmul.f32 %v26, %v35
  %v50 = vmul.f32 %v27, %v35
  %v51 = vmul.f32 %v28, %v35
  %v52 = vmul.f32 %v29, %v35
  %v53 = vld [vmem:[%s2] sm:$0x1]
  %v55 = vlaneseq
  %v56 = vshrl.u32 %v55, 7
  %v57 = vsub.s32 0, %v56
  %v58 = vrot.slane %v53, %v57
  %v60 = vadd.f32 %v37, %v58
  %v61 = vadd.f32 %v38, %v58
  %v62 = vadd.f32 %v39, %v58
  %v63 = vadd.f32 %v40, %v58
  %v64 = vadd.f32 %v41, %v58
  %v65 = vadd.f32 %v42, %v58
  %v66 = vadd.f32 %v43, %v58
  %v67 = vadd.f32 %v44, %v58
  %v68 = vadd.f32 %v45, %v58
  %v69 = vadd.f32 %v46, %v58
  %v70 = vadd.f32 %v47, %v58
  %v71 = vadd.f32 %v48, %v58
  %v72 = vadd.f32 %v49, %v58
  %v73 = vadd.f32 %v50, %v58
  %v74 = vadd.f32 %v51, %v58
  %v75 = vadd.f32 %v52, %v58
  %v76 = vmax.f32 %v60, 0.0
  %v77 = vmax.f32 %v61, 0.0
  %v78 = vmax.f32 %v62, 0.0
  %v79 = vmax.f32 %v63, 0.0
  %v80 = vmax.f32 %v64, 0.0
  %v81 = vmax.f32 %v65, 0.0
  %v82 = vmax.f32 %v66, 0.0
  %v83 = vmax.f32 %v67, 0.0
  %v84 = vmax.f32 %v68, 0.0
  %v85 = vmax.f32 %v69, 0.0
  %v86 = vmax.f32 %v70, 0.0
  %v87 = vmax.f32 %v71, 0.0
  %v88 = vmax.f32 %v72, 0.0
  %v89 = vmax.f32 %v73, 0.0
  %v90 = vmax.f32 %v74, 0.0
  %v91 = vmax.f32 %v75, 0.0
  %92 = vst [vmem:[%s3] sm:$0xff] %v76
  %93 = vst [vmem:[%s3 + $0x8] sm:$0xff] %v77
  %94 = vst [vmem:[%s3 + $0x10] sm:$0xff] %v78
  %95 = vst [vmem:[%s3 + $0x18] sm:$0xff] %v79
  %96 = vst [vmem:[%s3 + $0x20] sm:$0xff] %v80
  %97 = vst [vmem:[%s3 + $0x28] sm:$0xff] %v81
  %98 = vst [vmem:[%s3 + $0x30] sm:$0xff] %v82
  %99 = vst [vmem:[%s3 + $0x38] sm:$0xff] %v83
  %100 = vst [vmem:[%s3 + $0x40] sm:$0xff] %v84
  %101 = vst [vmem:[%s3 + $0x48] sm:$0xff] %v85
  %102 = vst [vmem:[%s3 + $0x50] sm:$0xff] %v86
  %103 = vst [vmem:[%s3 + $0x58] sm:$0xff] %v87
  %104 = vst [vmem:[%s3 + $0x60] sm:$0xff] %v88
  %105 = vst [vmem:[%s3 + $0x68] sm:$0xff] %v89
  %106 = vst [vmem:[%s3 + $0x70] sm:$0xff] %v90
  %107 = vst [vmem:[%s3 + $0x78] sm:$0xff] %v91
  // Predicated region
  $region14: #{yadapt_pixel_shuffle.3} parent=0 // pred_check
    _
  $region15: #{yadapt_pixel_shuffle.3} parent=0 // pred_check_branch
    %109 = sbr.rel (0) target = $region17
  $region16: #{yadapt_pixel_shuffle.3} parent=0 // pred_region
    _
  $region17: #{yadapt_pixel_shuffle.3} parent=0 // pred_fallthru
    _
  // Predicated region
  $region18: #{yadapt_pixel_shuffle.3} parent=0 // pred_check
    _
  $region19: #{yadapt_pixel_shuffle.3} parent=0 // pred_check_branch
    %111 = sbr.rel (0) target = $region21
  $region20: #{yadapt_pixel_shuffle.3} parent=0 // pred_region
    _
  $region21: #{yadapt_pixel_shuffle.3} parent=0 // pred_fallthru
    _

</llo_original>
